<compile_context>
chip_gen: v7x
topology: tpu7x:2x2x1
jax: 0.10.0
libtpu: 0.0.40
codegen_flags: <defaults>
</compile_context>

<pallas_src>
import functools

import jax
import jax.numpy as jnp
from jax.experimental import pallas as pl
from jax.experimental.pallas import tpu as pltpu

RED_KERNEL_SIZE = 3       # red_kernel_size in the PyTorch module (separable helper is k=3 only)
WITH_LOGITS = True        # with_logits in the PyTorch module

_LANE = 128
_VMEM_BLOCK_BUDGET = 24 * 1024 * 1024   # bytes used to size Nb (conservative for v7x's 64 MiB VMEM)
_VMEM_LIMIT_BYTES = 48 * 1024 * 1024    # explicit scoped-VMEM limit (> v5e 16 MiB / v7x 32 MiB defaults)

_COMPILER_PARAMS = pltpu.CompilerParams(
    dimension_semantics=("parallel",),          # batch axis -> megacore sharding on v7x
    vmem_limit_bytes=_VMEM_LIMIT_BYTES,
)


def _avg3x3_sep(x, H, Wp):
    """Separable cyclic 3x3 mean over a (Nb, H, Wp) block (k=3 only).

    Wrap-around contributions only ever land on rows {0, H-1} and cols {0, >= W-1},
    which are zeroed (conv_t) or never selected (conv_x) downstream.
    """
    # lane (column) pass: x[j-1] + x[j] + x[j+1]
    s = x + pltpu.roll(x, 1, axis=2) + pltpu.roll(x, Wp - 1, axis=2)
    # sublane (row) pass: s[i-1] + s[i] + s[i+1]
    s = s + pltpu.roll(s, 1, axis=1) + pltpu.roll(s, H - 1, axis=1)
    return s * (1.0 / float(RED_KERNEL_SIZE ** 2))


def _windowed_block(x, t, H, W):
    """sigmoid + windowed-average blend on one (Nb, H, Wp) f32 block.

    W is the *unpadded* width; lanes >= W are zero padding and are masked out of conv_t.
    Returns (pred, tgt) where tgt == zero-bordered conv of target.
    """
    if WITH_LOGITS:
        x = jax.nn.sigmoid(x)
    if RED_KERNEL_SIZE == 1:
        return x, t

    p = (RED_KERNEL_SIZE - 1) // 2
    Wp = x.shape[2]
    conv_x = _avg3x3_sep(x, H, Wp)
    conv_t = _avg3x3_sep(t, H, Wp)

    # Single interior mask, applied only to conv_t. conv_x border values are dead:
    # where conv_t == 0 the blend keeps x, exactly matching the reference.
    row = jax.lax.broadcasted_iota(jnp.int32, (1, H, Wp), 1)
    col = jax.lax.broadcasted_iota(jnp.int32, (1, H, Wp), 2)
    interior = (row >= p) & (row < H - p) & (col >= p) & (col < W - p)
    conv_t = jnp.where(interior, conv_t, 0.0)

    # One VPU select instead of cast + sub + mul + add.
    x = jnp.where(conv_t > 0.0, conv_x, x)
    return x, conv_t


def _transform_kernel(x_ref, t_ref, pred_ref, tgt_ref, *, H, W):
    x = x_ref[...].astype(jnp.float32)
    t = t_ref[...].astype(jnp.float32)
    pred, tgt = _windowed_block(x, t, H, W)
    pred_ref[...] = pred.astype(pred_ref.dtype)
    tgt_ref[...] = tgt.astype(tgt_ref.dtype)


def _loss_sums_kernel(x_ref, t_ref, inter_ref, psum_ref, tsum_ref, *, H, W):
    """Fused variant: windowed transform + per-image dice partial sums (no full-size outputs)."""
    x = x_ref[...].astype(jnp.float32)
    t = t_ref[...].astype(jnp.float32)
    pred, tgt = _windowed_block(x, t, H, W)

    Wp = x.shape[2]
    if Wp != W:
        # Padded lanes hold sigmoid(0)=0.5 in pred; they must not count in sum(pred).
        col = jax.lax.broadcasted_iota(jnp.int32, (1, H, Wp), 2)
        pred = jnp.where(col < W, pred, 0.0)          # tgt is already 0 on padded lanes

    def _sum(v):  # (Nb, H, Wp) -> (Nb, 1, 1)
        return jnp.sum(jnp.sum(v, axis=2, keepdims=True), axis=1, keepdims=True)

    inter_ref[...] = _sum(pred * tgt)
    psum_ref[...] = _sum(pred)
    tsum_ref[...] = _sum(tgt)


def _pick_nb(N, H, Wp):
    """Images per grid step: as many as fit the VMEM budget, but keep >= 2 grid steps if possible."""
    per_img = 4 * 2 * H * Wp * 4            # 4 arrays x double-buffer x f32
    nb_max = max(1, _VMEM_BLOCK_BUDGET // per_img)
    target = max(1, min(int(nb_max), N, pl.cdiv(N, 2)))
    for nb in range(target, 0, -1):
        if N % nb == 0:
            return nb
    return 1


def _prep(x, target):
    N, C, H, W = x.shape
    assert C == 1, "F.conv2d with a (1,1,k,k) kernel requires a single input channel"
    assert RED_KERNEL_SIZE in (1, 3), "separable window helper is written for k=3 (or k=1 no-op)"
    if RED_KERNEL_SIZE == 3:
        assert H >= 3 and W >= 3, "cyclic-roll trick needs H, W >= 3"

    Wp = max(_LANE, pl.cdiv(W, _LANE) * _LANE)      # lane-dense last dim (multiple of 128)
    xs = x.reshape(N, H, W)
    ts = target.reshape(N, H, W).astype(x.dtype)
    if Wp != W:
        pad = ((0, 0), (0, 0), (0, Wp - W))
        xs = jnp.pad(xs, pad)
        ts = jnp.pad(ts, pad)

    Nb = _pick_nb(N, H, Wp)
    grid = (N // Nb,)
    img_spec = pl.BlockSpec((Nb, H, Wp), lambda n: (n, 0, 0))
    return xs, ts, N, H, W, Wp, Nb, grid, img_spec


def windowed_transform(x, target):
    """Runs the _Windowed preprocessing (sigmoid + windowed averaging + blend); returns (pred, tgt)."""
    xs, ts, N, H, W, Wp, Nb, grid, img_spec = _prep(x, target)
    pred, tgt = pl.pallas_call(
        functools.partial(_transform_kernel, H=H, W=W),
        out_shape=(jax.ShapeDtypeStruct((N, H, Wp), x.dtype),
                   jax.ShapeDtypeStruct((N, H, Wp), x.dtype)),
        grid=grid,
        in_specs=[img_spec, img_spec],
        out_specs=(img_spec, img_spec),
        compiler_params=_COMPILER_PARAMS,
    )(xs, ts)
    pred = pred[:, :, :W].reshape(N, 1, H, W)
    tgt = tgt[:, :, :W].reshape(N, 1, H, W)
    return pred, tgt


def windowed_loss(x, target, eps=1e-6):
    """Fused _Windowed + soft-dice loss: the dice reductions run inside the kernel.

    TODO(synk): `loss_class` is an injected constructor argument of _Windowed and is not
    defined in the provided source; a standard soft Dice loss over the windowed tensors
    (the file is dice.py) is used here as the representative loss.
    """
    xs, ts, N, H, W, Wp, Nb, grid, img_spec = _prep(x, target)
    sum_spec = pl.BlockSpec((Nb, 1, 1), lambda n: (n, 0, 0))
    inter, psum, tsum = pl.pallas_call(
        functools.partial(_loss_sums_kernel, H=H, W=W),
        out_shape=(jax.ShapeDtypeStruct((N, 1, 1), jnp.float32),
                   jax.ShapeDtypeStruct((N, 1, 1), jnp.float32),
                   jax.ShapeDtypeStruct((N, 1, 1), jnp.float32)),
        grid=grid,
        in_specs=[img_spec, img_spec],
        out_specs=(sum_spec, sum_spec, sum_spec),
        compiler_params=_COMPILER_PARAMS,
    )(xs, ts)
    inter = inter.reshape(N)
    denom = psum.reshape(N) + tsum.reshape(N)
    dice = (2.0 * inter + eps) / (denom + eps)
    return jnp.mean(1.0 - dice)


if __name__ == "__main__":
    key = jax.random.PRNGKey(0)
    k1, k2 = jax.random.split(key)
    # logits (with_logits=True) and a binary target mask, NCHW with C=1
    x = jax.random.normal(k1, (2, 1, 16, 16), dtype=jnp.float32)
    t = (jax.random.uniform(k2, (2, 1, 16, 16)) > 0.5).astype(jnp.float32)

    pred, tgt = windowed_transform(x, t)     # full windowed tensors
    loss = windowed_loss(x, t)               # fused transform + dice reduction
    jax.block_until_ready((pred, tgt, loss))
    print("KERNEL_OK")
</pallas_src>

<mosaic_0001>
module attributes {stable_mosaic.version = 11 : i64} {
  func.func @_transform_kernel(%arg0: i32, %arg1: memref<1x16x128xf32, #tpu.memory_space<vmem>>, %arg2: memref<1x16x128xf32, #tpu.memory_space<vmem>>, %arg3: memref<1x16x128xf32, #tpu.memory_space<vmem>>, %arg4: memref<1x16x128xf32, #tpu.memory_space<vmem>>) attributes {dimension_semantics = [#tpu.dimension_semantics<parallel>], iteration_bounds = array<i64: 2>, scalar_prefetch = 0 : i64, scratch_operands = 0 : i64, tpu.core_type = #tpu.core_type<tc>, window_params = [{transform_indices = @transform_0, window_bounds = array<i64: 1, 16, 128>}, {transform_indices = @transform_1, window_bounds = array<i64: 1, 16, 128>}, {transform_indices = @transform_2, window_bounds = array<i64: 1, 16, 128>}, {transform_indices = @transform_3, window_bounds = array<i64: 1, 16, 128>}]} {
    %c0 = arith.constant 0 : index
    %c0_0 = arith.constant 0 : index
    %c0_1 = arith.constant 0 : index
    %0 = vector.load %arg1[%c0, %c0_0, %c0_1] : memref<1x16x128xf32, #tpu.memory_space<vmem>>, vector<1x16x128xf32>
    %c0_2 = arith.constant 0 : index
    %c0_3 = arith.constant 0 : index
    %c0_4 = arith.constant 0 : index
    %1 = vector.load %arg2[%c0_2, %c0_3, %c0_4] : memref<1x16x128xf32, #tpu.memory_space<vmem>>, vector<1x16x128xf32>
    %2 = arith.negf %0 : vector<1x16x128xf32>
    %3 = math.exp %2 : vector<1x16x128xf32>
    %cst = arith.constant 1.000000e+00 : f32
    %4 = vector.broadcast %cst : f32 to vector<1x16x128xf32>
    %5 = arith.addf %4, %3 : vector<1x16x128xf32>
    %6 = arith.divf %4, %5 : vector<1x16x128xf32>
    %c1_i32 = arith.constant 1 : i32
    %7 = tpu.dynamic_rotate %6 by %c1_i32 dim 2 : vector<1x16x128xf32>, i32 -> vector<1x16x128xf32>
    %8 = arith.addf %6, %7 : vector<1x16x128xf32>
    %c127_i32 = arith.constant 127 : i32
    %9 = tpu.dynamic_rotate %6 by %c127_i32 dim 2 : vector<1x16x128xf32>, i32 -> vector<1x16x128xf32>
    %10 = arith.addf %8, %9 : vector<1x16x128xf32>
    %c1_i32_5 = arith.constant 1 : i32
    %11 = tpu.dynamic_rotate %10 by %c1_i32_5 dim 1 : vector<1x16x128xf32>, i32 -> vector<1x16x128xf32>
    %12 = arith.addf %10, %11 : vector<1x16x128xf32>
    %c15_i32 = arith.constant 15 : i32
    %13 = tpu.dynamic_rotate %10 by %c15_i32 dim 1 : vector<1x16x128xf32>, i32 -> vector<1x16x128xf32>
    %14 = arith.addf %12, %13 : vector<1x16x128xf32>
    %cst_6 = arith.constant 0.111111112 : f32
    %15 = vector.broadcast %cst_6 : f32 to vector<1x16x128xf32>
    %16 = arith.mulf %14, %15 : vector<1x16x128xf32>
    %c1_i32_7 = arith.constant 1 : i32
    %17 = tpu.dynamic_rotate %1 by %c1_i32_7 dim 2 : vector<1x16x128xf32>, i32 -> vector<1x16x128xf32>
    %18 = arith.addf %1, %17 : vector<1x16x128xf32>
    %c127_i32_8 = arith.constant 127 : i32
    %19 = tpu.dynamic_rotate %1 by %c127_i32_8 dim 2 : vector<1x16x128xf32>, i32 -> vector<1x16x128xf32>
    %20 = arith.addf %18, %19 : vector<1x16x128xf32>
    %c1_i32_9 = arith.constant 1 : i32
    %21 = tpu.dynamic_rotate %20 by %c1_i32_9 dim 1 : vector<1x16x128xf32>, i32 -> vector<1x16x128xf32>
    %22 = arith.addf %20, %21 : vector<1x16x128xf32>
    %c15_i32_10 = arith.constant 15 : i32
    %23 = tpu.dynamic_rotate %20 by %c15_i32_10 dim 1 : vector<1x16x128xf32>, i32 -> vector<1x16x128xf32>
    %24 = arith.addf %22, %23 : vector<1x16x128xf32>
    %cst_11 = arith.constant 0.111111112 : f32
    %25 = vector.broadcast %cst_11 : f32 to vector<1x16x128xf32>
    %26 = arith.mulf %24, %25 : vector<1x16x128xf32>
    %27 = tpu.iota {dimensions = array<i32: 1>} : vector<1x16x128xi32>
    %28 = tpu.iota {dimensions = array<i32: 2>} : vector<1x16x128xi32>
    %c1_i32_12 = arith.constant 1 : i32
    %29 = vector.broadcast %c1_i32_12 : i32 to vector<1x16x128xi32>
    %30 = arith.cmpi sge, %27, %29 : vector<1x16x128xi32>
    %c15_i32_13 = arith.constant 15 : i32
    %31 = vector.broadcast %c15_i32_13 : i32 to vector<1x16x128xi32>
    %32 = arith.cmpi slt, %27, %31 : vector<1x16x128xi32>
    %33 = arith.andi %30, %32 : vector<1x16x128xi1>
    %c1_i32_14 = arith.constant 1 : i32
    %34 = vector.broadcast %c1_i32_14 : i32 to vector<1x16x128xi32>
    %35 = arith.cmpi sge, %28, %34 : vector<1x16x128xi32>
    %36 = arith.andi %33, %35 : vector<1x16x128xi1>
    %c15_i32_15 = arith.constant 15 : i32
    %37 = vector.broadcast %c15_i32_15 : i32 to vector<1x16x128xi32>
    %38 = arith.cmpi slt, %28, %37 : vector<1x16x128xi32>
    %39 = arith.andi %36, %38 : vector<1x16x128xi1>
    %cst_16 = arith.constant 0.000000e+00 : f32
    %40 = vector.broadcast %cst_16 : f32 to vector<1x16x128xf32>
    %41 = arith.select %39, %26, %40 : vector<1x16x128xi1>, vector<1x16x128xf32>
    %cst_17 = arith.constant 0.000000e+00 : f32
    %42 = vector.broadcast %cst_17 : f32 to vector<1x16x128xf32>
    %43 = arith.cmpf ogt, %41, %42 : vector<1x16x128xf32>
    %44 = arith.select %43, %16, %6 : vector<1x16x128xi1>, vector<1x16x128xf32>
    %c0_18 = arith.constant 0 : index
    %c0_19 = arith.constant 0 : index
    %c0_20 = arith.constant 0 : index
    %45 = vector.load %arg3[%c0_18, %c0_19, %c0_20] : memref<1x16x128xf32, #tpu.memory_space<vmem>>, vector<1x16x128xf32>
    tpu.vector_store %arg3[%c0_18, %c0_19, %c0_20], %44 {strides = array<i32>} : memref<1x16x128xf32, #tpu.memory_space<vmem>>, vector<1x16x128xf32>,
    %c0_21 = arith.constant 0 : index
    %c0_22 = arith.constant 0 : index
    %c0_23 = arith.constant 0 : index
    %46 = vector.load %arg4[%c0_21, %c0_22, %c0_23] : memref<1x16x128xf32, #tpu.memory_space<vmem>>, vector<1x16x128xf32>
    tpu.vector_store %arg4[%c0_21, %c0_22, %c0_23], %41 {strides = array<i32>} : memref<1x16x128xf32, #tpu.memory_space<vmem>>, vector<1x16x128xf32>,
    return
  }
  func.func @transform_0(%arg0: i32) -> (i32, i32, i32) {
    %c0_i32 = arith.constant 0 : i32
    %c0_i32_0 = arith.constant 0 : i32
    %c0_i32_1 = arith.constant 0 : i32
    return %arg0, %c0_i32, %c0_i32_0 : i32, i32, i32
  }
  func.func @transform_1(%arg0: i32) -> (i32, i32, i32) {
    %c0_i32 = arith.constant 0 : i32
    %c0_i32_0 = arith.constant 0 : i32
    %c0_i32_1 = arith.constant 0 : i32
    return %arg0, %c0_i32, %c0_i32_0 : i32, i32, i32
  }
  func.func @transform_2(%arg0: i32) -> (i32, i32, i32) {
    %c0_i32 = arith.constant 0 : i32
    %c0_i32_0 = arith.constant 0 : i32
    %c0_i32_1 = arith.constant 0 : i32
    return %arg0, %c0_i32, %c0_i32_0 : i32, i32, i32
  }
  func.func @transform_3(%arg0: i32) -> (i32, i32, i32) {
    %c0_i32 = arith.constant 0 : i32
    %c0_i32_0 = arith.constant 0 : i32
    %c0_i32_1 = arith.constant 0 : i32
    return %arg0, %c0_i32, %c0_i32_0 : i32, i32, i32
  }
}

</mosaic_0001>

<llo_original>
// kernel: tpu_custom_call.1
$region0: #{tpu_custom_call.1}
  #allocation0 [shape = 'u32[]', space=smem, size = 0x4, offset = 0x4, fixed_abs, tag = 'smem constant byte address 0x4 - core index']
  #allocation1 [shape = 'u32[144,128]{1,0:T(1,128)}', space=vmem, size = 0x12000, scoped, tag = 'internal scratch']
  %s0 = inlined_call_operand.hbm [shape: f32[2,16,128], index: 0, kind: input, shape index: {}]
  %s1 = inlined_call_operand.hbm [shape: f32[2,16,128], index: 1, kind: input, shape index: {}]
  %s2 = inlined_call_operand.hbm [shape: f32[2,16,128], index: 2, kind: output, shape index: {0}]
  %s3 = inlined_call_operand.hbm [shape: f32[2,16,128], index: 3, kind: output, shape index: {1}]
  %4 = xla_tuple %s2, %s3
  %s5 = sld [smem:[#allocation0]]
  $region57: #{tpu_custom_call.1} parent=0
    _
  %s7 = ssub.s32 1, %s5
  %s8 = scalar_select 0, %s7, %s5
  $region1: #{tpu_custom_call.1} parent=0
    #allocation2 [shape = 'u8[16384]{0}', space=vmem, size = 0x4000, scoped, tag = 'input window, operand 0']
    #allocation3 [shape = 's32[2]{0}', space=sflag, size = 0x8, scoped, tag = 'scoped memory for tpu_custom_call.1']
    #allocation4 [shape = 's32[2]{0}', space=sflag, size = 0x8, scoped, tag = 'scoped memory for tpu_custom_call.1']
    #allocation5 [shape = 'u8[16384]{0}', space=vmem, size = 0x4000, scoped, tag = 'input window, operand 1']
    #allocation6 [shape = 's32[2]{0}', space=sflag, size = 0x8, scoped, tag = 'scoped memory for tpu_custom_call.1']
    #allocation7 [shape = 'u8[16384]{0}', space=vmem, size = 0x4000, scoped, tag = 'output window, operand 0']
    #allocation8 [shape = 'u8[16384]{0}', space=vmem, size = 0x4000, scoped, tag = 'output window, operand 1']
    #allocation9 [shape = 's32[2]{0}', space=sflag, size = 0x8, scoped, tag = 'scoped memory for tpu_custom_call.1']
    %9 = vsyncpa [#allocation3], 0
    %s10 = scalar_lea.sflag [#allocation3], 1
    %11 = vsyncpa %s10, 0
    %12 = vsyncpa [#allocation6], 0
    %s13 = scalar_lea.sflag [#allocation6], 1
    %14 = vsyncpa %s13, 0
    %15 = vsyncpa [#allocation4], 0
    %s16 = scalar_lea.sflag [#allocation4], 1
    %17 = vsyncpa %s16, 0
    %18 = vsyncpa [#allocation9], 0
    %s19 = scalar_lea.sflag [#allocation9], 1
    %20 = vsyncpa %s19, 0
    loop: start=0, step=1, limit=4
    $region2: #{tpu_custom_call.1} parent=1 // loop_pre_header
      _
    $region3: #{tpu_custom_call.1} parent=1 // loop_header
      %s22 = sphi 0, %s26
      %p23 = scmp.ge.s32.totalorder %s22, 4
      %s32 = sphi 0, %s34
      %s35 = sphi 0, %s32
      %s36 = sphi 0, %s35
      %s52 = sphi 0, %s36
      %s58 = sphi 0, %s60
      %s61 = sphi 0, %s58
      %s62 = sphi 0, %s61
      %s78 = sphi 0, %s62
      %s84 = sphi 0, %s86
      %s87 = sphi 0, %s84
      %s88 = sphi 0, %s87
      %s104 = sphi 0, %s88
      %s110 = sphi 0, %s112
      %s113 = sphi 0, %s110
      %s114 = sphi 0, %s113
      %s130 = sphi 0, %s114
    $region4: #{tpu_custom_call.1} parent=1 // loop_header_branch
      %25 = sbr.rel (%p23) target = $region8
    $region5: #{tpu_custom_call.1} parent=1 // loop_body
      %s27 = ssub.s32 %s22, 1
      %s28 = ssub.s32 %s22, 2
      %s29 = sadd.s32 %s22, 1
      %s30 = ssub.s32 %s22, %s29
      %p31 = scmp.eq.s32.totalorder %s30, 0
      %s33 = sadd.s32 %s32, 1
      %s34 = scalar_select %p31, %s32, %s33
      %p37 = pneg %p31
      %p38 = scmp.eq.s32.totalorder %s22, 1
      %p39 = por %p37, %p38
      %p40 = scmp.ne.s32.totalorder %s32, %s35
      %p41 = scmp.eq.s32.totalorder %s22, 0
      %p42 = por %p40, %p41
      %p43 = scmp.ne.s32.totalorder %s32, %s35
      %p44 = scmp.eq.s32.totalorder %s27, 1
      %p45 = por %p43, %p44
      %p46 = scmp.ne.s32.totalorder %s35, %s36
      %p47 = scmp.eq.s32.totalorder %s27, 0
      %p48 = por %p46, %p47
      %p49 = scmp.ne.s32.totalorder %s35, %s36
      %p50 = scmp.eq.s32.totalorder %s28, 1
      %p51 = por %p49, %p50
      %p53 = scmp.ne.s32.totalorder %s36, %s52
      %p54 = scmp.eq.s32.totalorder %s28, 0
      %p55 = por %p53, %p54
      %s56 = ssub.s32 %s22, %s29
      %p57 = scmp.eq.s32.totalorder %s56, 0
      %s59 = sadd.s32 %s58, 1
      %s60 = scalar_select %p57, %s58, %s59
      %p63 = pneg %p57
      %p64 = scmp.eq.s32.totalorder %s22, 1
      %p65 = por %p63, %p64
      %p66 = scmp.ne.s32.totalorder %s58, %s61
      %p67 = scmp.eq.s32.totalorder %s22, 0
      %p68 = por %p66, %p67
      %p69 = scmp.ne.s32.totalorder %s58, %s61
      %p70 = scmp.eq.s32.totalorder %s27, 1
      %p71 = por %p69, %p70
      %p72 = scmp.ne.s32.totalorder %s61, %s62
      %p73 = scmp.eq.s32.totalorder %s27, 0
      %p74 = por %p72, %p73
      %p75 = scmp.ne.s32.totalorder %s61, %s62
      %p76 = scmp.eq.s32.totalorder %s28, 1
      %p77 = por %p75, %p76
      %p79 = scmp.ne.s32.totalorder %s62, %s78
      %p80 = scmp.eq.s32.totalorder %s28, 0
      %p81 = por %p79, %p80
      %s82 = ssub.s32 %s22, %s29
      %p83 = scmp.eq.s32.totalorder %s82, 0
      %s85 = sadd.s32 %s84, 1
      %s86 = scalar_select %p83, %s84, %s85
      %p89 = pneg %p83
      %p90 = scmp.eq.s32.totalorder %s22, 1
      %p91 = por %p89, %p90
      %p92 = scmp.ne.s32.totalorder %s84, %s87
      %p93 = scmp.eq.s32.totalorder %s22, 0
      %p94 = por %p92, %p93
      %p95 = scmp.ne.s32.totalorder %s84, %s87
      %p96 = scmp.eq.s32.totalorder %s27, 1
      %p97 = por %p95, %p96
      %p98 = scmp.ne.s32.totalorder %s87, %s88
      %p99 = scmp.eq.s32.totalorder %s27, 0
      %p100 = por %p98, %p99
      %p101 = scmp.ne.s32.totalorder %s87, %s88
      %p102 = scmp.eq.s32.totalorder %s28, 1
      %p103 = por %p101, %p102
      %p105 = scmp.ne.s32.totalorder %s88, %s104
      %p106 = scmp.eq.s32.totalorder %s28, 0
      %p107 = por %p105, %p106
      %s108 = ssub.s32 %s22, %s29
      %p109 = scmp.eq.s32.totalorder %s108, 0
      %s111 = sadd.s32 %s110, 1
      %s112 = scalar_select %p109, %s110, %s111
      %p115 = pneg %p109
      %p116 = scmp.eq.s32.totalorder %s22, 1
      %p117 = por %p115, %p116
      %p118 = scmp.ne.s32.totalorder %s110, %s113
      %p119 = scmp.eq.s32.totalorder %s22, 0
      %p120 = por %p118, %p119
      %p121 = scmp.ne.s32.totalorder %s110, %s113
      %p122 = scmp.eq.s32.totalorder %s27, 1
      %p123 = por %p121, %p122
      %p124 = scmp.ne.s32.totalorder %s113, %s114
      %p125 = scmp.eq.s32.totalorder %s27, 0
      %p126 = por %p124, %p125
      %p127 = scmp.ne.s32.totalorder %s113, %s114
      %p128 = scmp.eq.s32.totalorder %s28, 1
      %p129 = por %p127, %p128
      %p131 = scmp.ne.s32.totalorder %s114, %s130
      %p132 = scmp.eq.s32.totalorder %s28, 0
      %p133 = por %p131, %p132
      %p134 = scmp.le.s32.totalorder 1, %s22
      %p135 = scmp.lt.s32.totalorder %s22, 3
      %p136 = pnand %p134, %p135
      %p137 = pneg %p136
      // Predicated region
      $region9: #{tpu_custom_call.1} parent=5 // pred_check
        _
      $region10: #{tpu_custom_call.1} parent=5 // pred_check_branch
        %139 = sbr.rel (%p136) target = $region12
      $region11: #{tpu_custom_call.1} parent=5 // pred_region
        %s140 = ssub.s32 %s22, 1
      $region12: #{tpu_custom_call.1} parent=5 // pred_fallthru
        _
      %p141 = scmp.lt.s32.totalorder %s22, 2
      // Predicated region
      $region13: #{tpu_custom_call.1} parent=5 // pred_check
        %p142 = pneg %p141
      $region14: #{tpu_custom_call.1} parent=5 // pred_check_branch
        %144 = sbr.rel (%p142) target = $region16
      $region15: #{tpu_custom_call.1} parent=5 // pred_region
        // Predicated region
        $region17: #{tpu_custom_call.1} parent=15 // pred_check
          %p145 = pneg %p42
        $region18: #{tpu_custom_call.1} parent=15 // pred_check_branch
          %147 = sbr.rel (%p145) target = $region20
        $region19: #{tpu_custom_call.1} parent=15 // pred_region
          %s148 = sand.u32 %s32, 1
          %s149 = scalar_lea.sflag [#allocation3], %s148
          %s150 = sand.u32 %s32, 1
          %s151 = smul.addr %s150, 16
          %s152 = scalar_lea.vmem [#allocation2], %s151
          %s154 = ssub.s32 256, 256
          %155 = vsyncadd %s149, %s154
          %s156 = smul.addr %s22, 2
          %s157 = smul.addr %s156, 128
          %s158 = scalar_lea.hbm %s0, %s157
          %s159 = sshll.u32 %s152, 4
          %s160 = int_to_ptr.vmem [resolvable:$true] %s159
          %165 = dma.hbm_to_vmem [thread:$0]  %s158, 256, %s160, %s149, 128, 128, 8
        $region20: #{tpu_custom_call.1} parent=15 // pred_fallthru
          _
        // Predicated region
        $region21: #{tpu_custom_call.1} parent=15 // pred_check
          %p166 = pneg %p68
        $region22: #{tpu_custom_call.1} parent=15 // pred_check_branch
          %168 = sbr.rel (%p166) target = $region24
        $region23: #{tpu_custom_call.1} parent=15 // pred_region
          %s169 = sand.u32 %s58, 1
          %s170 = scalar_lea.sflag [#allocation6], %s169
          %s171 = sand.u32 %s58, 1
          %s172 = smul.addr %s171, 16
          %s173 = scalar_lea.vmem [#allocation5], %s172
          %s175 = ssub.s32 256, 256
          %176 = vsyncadd %s170, %s175
          %s177 = smul.addr %s22, 2
          %s178 = smul.addr %s177, 128
          %s179 = scalar_lea.hbm %s1, %s178
          %s180 = sshll.u32 %s173, 4
          %s181 = int_to_ptr.vmem [resolvable:$true] %s180
          %186 = dma.hbm_to_vmem [thread:$0]  %s179, 256, %s181, %s170, 128, 128, 8
        $region24: #{tpu_custom_call.1} parent=15 // pred_fallthru
          _
      $region16: #{tpu_custom_call.1} parent=5 // pred_fallthru
        _
      %p187 = scmp.le.s32.totalorder 1, %s22
      %p188 = scmp.lt.s32.totalorder %s22, 3
      %p189 = pnand %p187, %p188
      %p190 = pneg %p189
      // Predicated region
      $region25: #{tpu_custom_call.1} parent=5 // pred_check
        _
      $region26: #{tpu_custom_call.1} parent=5 // pred_check_branch
        %192 = sbr.rel (%p189) target = $region28
      $region27: #{tpu_custom_call.1} parent=5 // pred_region
        %s193 = ssub.s32 %s22, 1
        %s194 = sand.u32 %s35, 1
        %s195 = scalar_lea.sflag [#allocation3], %s194
        %s196 = sand.u32 %s35, 1
        %s197 = smul.addr %s196, 16
        %s198 = scalar_lea.vmem [#allocation2], %s197
        // Predicated region
        $region29: #{tpu_custom_call.1} parent=27 // pred_check
          %p199 = pneg %p48
        $region30: #{tpu_custom_call.1} parent=27 // pred_check_branch
          %201 = sbr.rel (%p199) target = $region32
        $region31: #{tpu_custom_call.1} parent=27 // pred_region
          %202 = dma.done %s195, 256
        $region32: #{tpu_custom_call.1} parent=27 // pred_fallthru
          _
        %s203 = sand.u32 %s61, 1
        %s204 = scalar_lea.sflag [#allocation6], %s203
        %s205 = sand.u32 %s61, 1
        %s206 = smul.addr %s205, 16
        %s207 = scalar_lea.vmem [#allocation5], %s206
        // Predicated region
        $region33: #{tpu_custom_call.1} parent=27 // pred_check
          %p208 = pneg %p74
        $region34: #{tpu_custom_call.1} parent=27 // pred_check_branch
          %210 = sbr.rel (%p208) target = $region36
        $region35: #{tpu_custom_call.1} parent=27 // pred_region
          %211 = dma.done %s204, 256
        $region36: #{tpu_custom_call.1} parent=27 // pred_fallthru
          _
        %s212 = sand.u32 %s35, 1
        %s213 = scalar_lea.sflag [#allocation3], %s212
        %s214 = sand.u32 %s35, 1
        %s215 = smul.addr %s214, 16
        %s216 = scalar_lea.vmem [#allocation2], %s215
        %p217 = pneg %p48
        %p218 = pneg %p45
        %s219 = sand.u32 %s61, 1
        %s220 = scalar_lea.sflag [#allocation6], %s219
        %s221 = sand.u32 %s61, 1
        %s222 = smul.addr %s221, 16
        %s223 = scalar_lea.vmem [#allocation5], %s222
        %p224 = pneg %p74
        %p225 = pneg %p71
        %p226 = pneg %p100
        %p227 = pneg %p97
        %s228 = sand.u32 %s87, 1
        %s229 = scalar_lea.sflag [#allocation4], %s228
        %s230 = sand.u32 %s87, 1
        %s231 = smul.addr %s230, 16
        %s232 = scalar_lea.vmem [#allocation7], %s231
        %p233 = pneg %p126
        %p234 = pneg %p123
        %s235 = sand.u32 %s113, 1
        %s236 = scalar_lea.sflag [#allocation9], %s235
        %s237 = sand.u32 %s113, 1
        %s238 = smul.addr %s237, 16
        %s239 = scalar_lea.vmem [#allocation8], %s238
        %v240 = vld [vmem:[%s198] sm:$0xff]
        %v241 = vld [vmem:[%s198 + $0x8] sm:$0xff]
        %v242 = vld [vmem:[%s207] sm:$0xff]
        %v243 = vld [vmem:[%s207 + $0x8] sm:$0xff]
        %v244 = vxor.u32 %v240, 2147483648
        %v245 = vxor.u32 %v241, 2147483648
        %v246 = vmul.f32 %v244, 1.442695
        %v247 = vpow.pop %v246
        %v248 = vmul.f32 %v245, 1.442695
        %v249 = vpow.pop %v248
        %v250 = vadd.f32 %v247, 1.0
        %v251 = vadd.f32 %v249, 1.0
        %v252 = vrcp.pop %v250
        %v253 = vmul.f32 1.0, %v252
        %v254 = vrcp.pop %v251
        %v255 = vmul.f32 1.0, %v254
        %256 = vrot.lane.b32.xlu0 %v253, 1
        %v257 = vpop.permute.xlu0 %256
        %258 = vrot.lane.b32.xlu0 %v255, 1
        %v259 = vpop.permute.xlu0 %258
        %v260 = vadd.f32 %v253, %v257
        %v261 = vadd.f32 %v255, %v259
        %262 = vrot.lane.b32.xlu0 %v253, 127
        %v263 = vpop.permute.xlu0 %262
        %264 = vrot.lane.b32.xlu0 %v255, 127
        %v265 = vpop.permute.xlu0 %264
        %v266 = vadd.f32 %v260, %v263
        %v267 = vadd.f32 %v261, %v265
        %v268 = vrot.slane %v266, 7
        %v269 = vrot.slane %v267, 7
        %v270 = vlaneseq
        %v271 = vshrl.u32 %v270, 7
        %vm272 = vcmp.lt.s32.totalorder %v271, 1
        %v273 = vsel %vm272, %v268, %v269
        %v274 = vsel %vm272, %v269, %v268
        %v275 = vadd.f32 %v266, %v274
        %v276 = vadd.f32 %v267, %v273
        %v277 = vrot.slane %v266, 1
        %v278 = vrot.slane %v267, 1
        %vm279 = vcmp.lt.s32.totalorder %v271, 7
        %v280 = vsel %vm279, %v277, %v278
        %v281 = vsel %vm279, %v278, %v277
        %v282 = vadd.f32 %v275, %v280
        %v283 = vadd.f32 %v276, %v281
        %v284 = vmul.f32 %v282, 0.11111111
        %v285 = vmul.f32 %v283, 0.11111111
        %286 = vrot.lane.b32.xlu0 %v242, 1
        %v287 = vpop.permute.xlu0 %286
        %288 = vrot.lane.b32.xlu0 %v243, 1
        %v289 = vpop.permute.xlu0 %288
        %v290 = vadd.f32 %v242, %v287
        %v291 = vadd.f32 %v243, %v289
        %292 = vrot.lane.b32.xlu0 %v242, 127
        %v293 = vpop.permute.xlu0 %292
        %294 = vrot.lane.b32.xlu0 %v243, 127
        %v295 = vpop.permute.xlu0 %294
        %v296 = vadd.f32 %v290, %v293
        %v297 = vadd.f32 %v291, %v295
        %v298 = vrot.slane %v296, 7
        %v299 = vrot.slane %v297, 7
        %v300 = vsel %vm272, %v298, %v299
        %v301 = vsel %vm272, %v299, %v298
        %v302 = vadd.f32 %v296, %v301
        %v303 = vadd.f32 %v297, %v300
        %v304 = vrot.slane %v296, 1
        %v305 = vrot.slane %v297, 1
        %v306 = vsel %vm279, %v304, %v305
        %v307 = vsel %vm279, %v305, %v304
        %v308 = vadd.f32 %v302, %v306
        %v309 = vadd.f32 %v303, %v307
        %v310 = vmul.f32 %v308, 0.11111111
        %v311 = vmul.f32 %v309, 0.11111111
        %v312 = vadd.s32 %v271, 8
        %v313 = vlaneseq
        %v314 = vand.u32 %v313, 127
        %vm315 = vcmp.ge.s32.totalorder %v271, 1
        %vm316 = vcmp.ge.s32.totalorder %v312, 1
        %vm317 = vcmp.lt.s32.totalorder %v271, 15
        %vm318 = vcmp.lt.s32.totalorder %v312, 15
        %vm319 = vmand %vm315, %vm317
        %vm320 = vmand %vm316, %vm318
        %vm321 = vcmp.ge.s32.totalorder %v314, 1
        %vm322 = vmand %vm319, %vm321
        %vm323 = vmand %vm320, %vm321
        %vm324 = vcmp.lt.s32.totalorder %v314, 15
        %vm325 = vmand %vm322, %vm324
        %vm326 = vmand %vm323, %vm324
        %v327 = vsel %vm325, %v310, 0.0
        %v328 = vsel %vm326, %v311, 0.0
        %vm329 = vcmp.gt.f32.partialorder %v327, 0.0
        %vm330 = vcmp.gt.f32.partialorder %v328, 0.0
        %v331 = vsel %vm329, %v284, %v253
        %v332 = vsel %vm330, %v285, %v255
        %333 = vst [vmem:[%s232] sm:$0xff] %v331
        %334 = vst [vmem:[%s232 + $0x8] sm:$0xff] %v332
        %335 = vst [vmem:[%s239] sm:$0xff] %v327
        %336 = vst [vmem:[%s239 + $0x8] sm:$0xff] %v328
        %s337 = sand.u32 %s87, 1
        %s338 = scalar_lea.sflag [#allocation4], %s337
        %s339 = sand.u32 %s87, 1
        %s340 = smul.addr %s339, 16
        %s341 = scalar_lea.vmem [#allocation7], %s340
        %s342 = sand.u32 %s113, 1
        %s343 = scalar_lea.sflag [#allocation9], %s342
        %s344 = sand.u32 %s113, 1
        %s345 = smul.addr %s344, 16
        %s346 = scalar_lea.vmem [#allocation8], %s345
        // Predicated region
        $region37: #{tpu_custom_call.1} parent=27 // pred_check
          %p347 = pneg %p97
        $region38: #{tpu_custom_call.1} parent=27 // pred_check_branch
          %349 = sbr.rel (%p347) target = $region40
        $region39: #{tpu_custom_call.1} parent=27 // pred_region
          %s351 = ssub.s32 256, 256
          %352 = vsyncadd %s338, %s351
          %s353 = smul.addr %s27, 2
          %s354 = smul.addr %s353, 128
          %s355 = scalar_lea.hbm %s2, %s354
          %s356 = sshll.u32 %s341, 4
          %s357 = int_to_ptr.vmem [resolvable:$true] %s356
          %362 = dma.vmem_to_hbm [thread:$0]  %s357, 256, %s355, %s338, 128, 128, 8
        $region40: #{tpu_custom_call.1} parent=27 // pred_fallthru
          _
        // Predicated region
        $region41: #{tpu_custom_call.1} parent=27 // pred_check
          %p363 = pneg %p123
        $region42: #{tpu_custom_call.1} parent=27 // pred_check_branch
          %365 = sbr.rel (%p363) target = $region44
        $region43: #{tpu_custom_call.1} parent=27 // pred_region
          %s367 = ssub.s32 256, 256
          %368 = vsyncadd %s343, %s367
          %s369 = smul.addr %s27, 2
          %s370 = smul.addr %s369, 128
          %s371 = scalar_lea.hbm %s3, %s370
          %s372 = sshll.u32 %s346, 4
          %s373 = int_to_ptr.vmem [resolvable:$true] %s372
          %378 = dma.vmem_to_hbm [thread:$0]  %s373, 256, %s371, %s343, 128, 128, 8
        $region44: #{tpu_custom_call.1} parent=27 // pred_fallthru
          _
      $region28: #{tpu_custom_call.1} parent=5 // pred_fallthru
        _
      %p379 = scmp.le.s32.totalorder 2, %s22
      // Predicated region
      $region45: #{tpu_custom_call.1} parent=5 // pred_check
        %p380 = pneg %p379
      $region46: #{tpu_custom_call.1} parent=5 // pred_check_branch
        %382 = sbr.rel (%p380) target = $region48
      $region47: #{tpu_custom_call.1} parent=5 // pred_region
        %s383 = ssub.s32 %s22, 2
        // Predicated region
        $region49: #{tpu_custom_call.1} parent=47 // pred_check
          %p384 = pneg %p103
        $region50: #{tpu_custom_call.1} parent=47 // pred_check_branch
          %386 = sbr.rel (%p384) target = $region52
        $region51: #{tpu_custom_call.1} parent=47 // pred_region
          %s387 = sand.u32 %s88, 1
          %s388 = scalar_lea.sflag [#allocation4], %s387
          %s389 = sand.u32 %s88, 1
          %s390 = smul.addr %s389, 16
          %s391 = scalar_lea.vmem [#allocation7], %s390
          %392 = dma.done %s388, 256
        $region52: #{tpu_custom_call.1} parent=47 // pred_fallthru
          _
        // Predicated region
        $region53: #{tpu_custom_call.1} parent=47 // pred_check
          %p393 = pneg %p129
        $region54: #{tpu_custom_call.1} parent=47 // pred_check_branch
          %395 = sbr.rel (%p393) target = $region56
        $region55: #{tpu_custom_call.1} parent=47 // pred_region
          %s396 = sand.u32 %s114, 1
          %s397 = scalar_lea.sflag [#allocation9], %s396
          %s398 = sand.u32 %s114, 1
          %s399 = smul.addr %s398, 16
          %s400 = scalar_lea.vmem [#allocation8], %s399
          %401 = dma.done %s397, 256
        $region56: #{tpu_custom_call.1} parent=47 // pred_fallthru
          _
      $region48: #{tpu_custom_call.1} parent=5 // pred_fallthru
        _
    $region6: #{tpu_custom_call.1} parent=1 // loop_footer
      %s26 = sadd.s32 1, %s22
    $region7: #{tpu_custom_call.1} parent=1 // loop_footer_branch
      %21 = sbr.rel target = $region3
    $region8: #{tpu_custom_call.1} parent=1 // loop_exit
      _
    %402 = vsyncpa [#allocation3], 1
    %s403 = scalar_lea.sflag [#allocation3], 1
    %404 = vsyncpa %s403, 1
    %405 = vsyncpa [#allocation6], 1
    %s406 = scalar_lea.sflag [#allocation6], 1
    %407 = vsyncpa %s406, 1
    %408 = vsyncpa [#allocation4], 1
    %s409 = scalar_lea.sflag [#allocation4], 1
    %410 = vsyncpa %s409, 1
    %411 = vsyncpa [#allocation9], 1
    %s412 = scalar_lea.sflag [#allocation9], 1
    %413 = vsyncpa %s412, 1

</llo_original>
